<compile_context>
chip_gen: v7x
topology: tpu7x:2x2x1
jax: 0.10.0
libtpu: 0.0.40
codegen_flags: <defaults>
</compile_context>

<pallas_src>
import jax
import jax.numpy as jnp
from jax.experimental import pallas as pl
from jax.experimental.pallas import tpu as pltpu


# ----------------------------------------------------------------------------
# Pallas kernel:  out[b, t, d] = x[b, t, d] + pe[0, t, d]   (broadcast over batch)
# ----------------------------------------------------------------------------
def _add_pe_kernel(x_ref, pe_ref, o_ref):
    o_ref[...] = x_ref[...].astype(o_ref.dtype) + pe_ref[...].astype(o_ref.dtype)


def _nearest_resize_rows(pe_sd, t_out):
    """PyTorch F.interpolate(mode='nearest') along the sequence (row) axis."""
    s_in = pe_sd.shape[0]
    if s_in == t_out:
        return pe_sd
    # Exact integer nearest index: floor(i * s_in / t_out) == (i * s_in) // t_out.
    idx = (jnp.arange(t_out, dtype=jnp.int32) * s_in) // t_out
    return jnp.take(pe_sd, idx, axis=0)


def _select_tiles(B, T, D, pack, target_elems):
    """Pick (TB, TT, TD) block dims under a per-block element budget.

    TD (lane axis): full D unless D is a large multiple of 128 (then tile it).
    TT (sublane axis): multiple of the dtype sublane packing, or full T.
    TB (leading axis): whatever batch fits the remaining budget.
    Grid uses pl.cdiv, so tiles need not divide the array (ragged edges masked).
    """
    if D % 128 == 0 and D > target_elems:
        TD = max(128, (target_elems // 128) * 128)
    else:
        TD = D
    rows_budget = max(pack, target_elems // max(TD, 1))
    TT = T if T <= rows_budget else max(pack, (rows_budget // pack) * pack)
    TB = max(1, min(B, target_elems // max(TT * TD, 1)))
    return TB, TT, TD


@jax.jit
def encoder_positional_embedding(x, position_embedding):
    """x: (B, T, D) ; position_embedding: (1, S, D) ; returns (B, T, D) promoted dtype."""
    B, T, D = x.shape

    # Nearest resize along the sequence axis (tiny parameter -> plain XLA gather).
    pe = _nearest_resize_rows(position_embedding[0], T).reshape(1, T, D)  # (1, T, D)

    # Output dtype follows PyTorch type promotion (e.g. bf16 x + f32 param -> f32).
    out_dtype = jnp.promote_types(x.dtype, position_embedding.dtype)

    x_item = jnp.dtype(x.dtype).itemsize
    o_item = jnp.dtype(out_dtype).itemsize
    pe_item = jnp.dtype(pe.dtype).itemsize

    # Sublane packing of the narrowest streamed dtype (8 for 4B, 16 for 2B, 32 for 1B).
    pack = max(8, 32 // min(x_item, o_item))
    # ~4 MiB of (x + out) bytes per block -> ~8 MiB pipelined (double-buffered) VMEM.
    target_elems = (4 * 1024 * 1024) // (x_item + o_item)

    TB, TT, TD = _select_tiles(B, T, D, pack, target_elems)
    grid = (pl.cdiv(B, TB), pl.cdiv(T, TT), pl.cdiv(D, TD))

    cost = pl.CostEstimate(
        flops=B * T * D,
        transcendentals=0,
        bytes_accessed=B * T * D * (x_item + o_item) + T * D * pe_item,
    )

    out = pl.pallas_call(
        _add_pe_kernel,
        out_shape=jax.ShapeDtypeStruct((B, T, D), out_dtype),
        grid_spec=pltpu.PrefetchScalarGridSpec(
            num_scalar_prefetch=0,
            grid=grid,
            in_specs=[
                pl.BlockSpec((TB, TT, TD), lambda b, t, d: (b, t, d)),  # x tile
                pl.BlockSpec((1, TT, TD), lambda b, t, d: (0, t, d)),   # pe (batch-bcast)
            ],
            out_specs=pl.BlockSpec((TB, TT, TD), lambda b, t, d: (b, t, d)),
        ),
        compiler_params=pltpu.CompilerParams(
            dimension_semantics=("parallel", "parallel", "parallel"),
            vmem_limit_bytes=32 * 1024 * 1024,
        ),
        cost_estimate=cost,
    )(x, pe)
    return out


# ----------------------------------------------------------------------------
if __name__ == "__main__":
    key = jax.random.PRNGKey(0)
    k_pe, k_x1, k_x2, k_x3 = jax.random.split(key, 4)

    B, SEQ_LEN, D_MODEL = 2, 8, 32

    # Learnable parameter (nn.Parameter(torch.zeros(1, S, D)) in the reference; random
    # values here so the add is actually exercised).
    pos_embed = 0.02 * jax.random.normal(k_pe, (1, SEQ_LEN, D_MODEL), jnp.float32)

    # Path 1: T == seq_len  -> direct add of the parameter.
    x_same = jax.random.normal(k_x1, (B, SEQ_LEN, D_MODEL), jnp.float32)
    y_same = encoder_positional_embedding(x_same, pos_embed)

    # Path 2: T != seq_len  -> nearest-interpolated embedding along the seq axis.
    T2 = 6
    x_diff = jax.random.normal(k_x2, (B, T2, D_MODEL), jnp.float32)
    y_diff = encoder_positional_embedding(x_diff, pos_embed)

    # Path 3: mixed dtype (bf16 activations + f32 parameter) -> f32 output (promotion).
    x_bf16 = jax.random.normal(k_x3, (B, SEQ_LEN, D_MODEL), jnp.float32).astype(jnp.bfloat16)
    y_bf16 = encoder_positional_embedding(x_bf16, pos_embed)

    jax.block_until_ready((y_same, y_diff, y_bf16))

    # Pure-XLA reference checks.
    ref_same = x_same + pos_embed
    idx = (jnp.arange(T2, dtype=jnp.int32) * SEQ_LEN) // T2
    ref_diff = x_diff + pos_embed[0][idx][None]
    ref_bf16 = x_bf16 + pos_embed  # jnp promotes bf16+f32 -> f32, same as the kernel

    assert y_same.dtype == ref_same.dtype
    assert y_bf16.dtype == ref_bf16.dtype
    assert jnp.allclose(y_same, ref_same, atol=1e-6)
    assert jnp.allclose(y_diff, ref_diff, atol=1e-6)
    assert jnp.allclose(y_bf16, ref_bf16, atol=1e-6)

    print("KERNEL_OK")
</pallas_src>

<mosaic_0001>
module attributes {stable_mosaic.version = 11 : i64} {
  func.func @_add_pe_kernel(%arg0: i32, %arg1: i32, %arg2: i32, %arg3: memref<2x8x32xf32, #tpu.memory_space<vmem>>, %arg4: memref<1x8x32xf32, #tpu.memory_space<vmem>>, %arg5: memref<2x8x32xf32, #tpu.memory_space<vmem>>) attributes {dimension_semantics = [#tpu.dimension_semantics<parallel>, #tpu.dimension_semantics<parallel>, #tpu.dimension_semantics<parallel>], iteration_bounds = array<i64: 1, 1, 1>, scalar_prefetch = 0 : i64, scratch_operands = 0 : i64, tpu.core_type = #tpu.core_type<tc>, window_params = [{transform_indices = @transform_0, window_bounds = array<i64: 2, 8, 32>}, {transform_indices = @transform_1, window_bounds = array<i64: 1, 8, 32>}, {transform_indices = @transform_2, window_bounds = array<i64: 2, 8, 32>}]} {
    %c0 = arith.constant 0 : index
    %c0_0 = arith.constant 0 : index
    %c0_1 = arith.constant 0 : index
    %0 = vector.load %arg3[%c0, %c0_0, %c0_1] : memref<2x8x32xf32, #tpu.memory_space<vmem>>, vector<2x8x32xf32>
    %c0_2 = arith.constant 0 : index
    %c0_3 = arith.constant 0 : index
    %c0_4 = arith.constant 0 : index
    %1 = vector.load %arg4[%c0_2, %c0_3, %c0_4] : memref<1x8x32xf32, #tpu.memory_space<vmem>>, vector<1x8x32xf32>
    %2 = vector.broadcast %1 : vector<1x8x32xf32> to vector<2x8x32xf32>
    %3 = arith.addf %0, %2 : vector<2x8x32xf32>
    %c0_5 = arith.constant 0 : index
    %c0_6 = arith.constant 0 : index
    %c0_7 = arith.constant 0 : index
    %4 = vector.load %arg5[%c0_5, %c0_6, %c0_7] : memref<2x8x32xf32, #tpu.memory_space<vmem>>, vector<2x8x32xf32>
    tpu.vector_store %arg5[%c0_5, %c0_6, %c0_7], %3 {strides = array<i32>} : memref<2x8x32xf32, #tpu.memory_space<vmem>>, vector<2x8x32xf32>,
    return
  }
  func.func @transform_0(%arg0: i32, %arg1: i32, %arg2: i32) -> (i32, i32, i32) {
    %c0_i32 = arith.constant 0 : i32
    return %arg0, %arg1, %arg2 : i32, i32, i32
  }
  func.func @transform_1(%arg0: i32, %arg1: i32, %arg2: i32) -> (i32, i32, i32) {
    %c0_i32 = arith.constant 0 : i32
    %c0_i32_0 = arith.constant 0 : i32
    return %c0_i32, %arg1, %arg2 : i32, i32, i32
  }
  func.func @transform_2(%arg0: i32, %arg1: i32, %arg2: i32) -> (i32, i32, i32) {
    %c0_i32 = arith.constant 0 : i32
    return %arg0, %arg1, %arg2 : i32, i32, i32
  }
}

</mosaic_0001>

<llo_original>
// kernel: encoder_positional_embedding.1
$region0: #{encoder_positional_embedding.1}
  #allocation0 [shape = 'u32[]', space=smem, size = 0x4, offset = 0x4, fixed_abs, tag = 'smem constant byte address 0x4 - core index']
  #allocation1 [shape = 'u32[144,128]{1,0:T(1,128)}', space=vmem, size = 0x12000, scoped, tag = 'internal scratch']
  %s0 = inlined_call_operand.hbm [shape: f32[2,8,32], index: 0, kind: input, shape index: {}]
  %s1 = inlined_call_operand.hbm [shape: f32[1,8,32], index: 1, kind: input, shape index: {}]
  %s2 = inlined_call_operand.hbm [shape: f32[2,8,32], index: 2, kind: output, shape index: {}]
  %s3 = sld [smem:[#allocation0]]
  $region26: #{encoder_positional_embedding.1} parent=0
    _
  %s5 = ssub.s32 1, %s3
  %s6 = scalar_select 0, %s5, %s3
  $region1: #{encoder_positional_embedding.1} parent=0
    #allocation2 [shape = 'u8[8192]{0}', space=vmem, size = 0x2000, scoped, tag = 'input window, operand 0, single buffered']
    #allocation3 [shape = 's32[1]{0}', space=sflag, size = 0x4, scoped, tag = 'scoped memory for encoder_positional_embedding.1']
    #allocation4 [shape = 's32[1]{0}', space=sflag, size = 0x4, scoped, tag = 'scoped memory for encoder_positional_embedding.1']
    #allocation5 [shape = 'u8[4096]{0}', space=vmem, size = 0x1000, scoped, tag = 'input window, operand 1, single buffered']
    #allocation6 [shape = 's32[1]{0}', space=sflag, size = 0x4, scoped, tag = 'scoped memory for encoder_positional_embedding.1']
    #allocation7 [shape = 'u8[8192]{0}', space=vmem, size = 0x2000, scoped, tag = 'output window, operand 0, single buffered']
    %7 = vsyncpa [#allocation3], 0
    %8 = vsyncpa [#allocation6], 0
    %9 = vsyncpa [#allocation4], 0
    // Predicated region
    $region2: #{encoder_positional_embedding.1} parent=1 // pred_check
      _
    $region3: #{encoder_positional_embedding.1} parent=1 // pred_check_branch
      %11 = sbr.rel (0) target = $region5
    $region4: #{encoder_positional_embedding.1} parent=1 // pred_region
      %s13 = ssub.s32 256, 256
      %14 = vsyncadd [#allocation3], %s13
      %s15 = sshll.u32 [#allocation2], 4
      %s16 = int_to_ptr.vmem [resolvable:$true] %s15
      %21 = dma.hbm_to_vmem [thread:$0]  %s0, 256, %s16, [#allocation3], 128, 128, 8
    $region5: #{encoder_positional_embedding.1} parent=1 // pred_fallthru
      _
    // Predicated region
    $region6: #{encoder_positional_embedding.1} parent=1 // pred_check
      _
    $region7: #{encoder_positional_embedding.1} parent=1 // pred_check_branch
      %23 = sbr.rel (0) target = $region9
    $region8: #{encoder_positional_embedding.1} parent=1 // pred_region
      %s25 = ssub.s32 128, 128
      %26 = vsyncadd [#allocation6], %s25
      %s28 = sshll.u32 [#allocation5], 4
      %s29 = int_to_ptr.vmem [resolvable:$true] %s28
      %31 = dma.hbm_to_vmem [thread:$0]  %s1, 128, %s29, [#allocation6]
    $region9: #{encoder_positional_embedding.1} parent=1 // pred_fallthru
      _
    // Predicated region
    $region10: #{encoder_positional_embedding.1} parent=1 // pred_check
      _
    $region11: #{encoder_positional_embedding.1} parent=1 // pred_check_branch
      %33 = sbr.rel (0) target = $region13
    $region12: #{encoder_positional_embedding.1} parent=1 // pred_region
      %34 = dma.done [#allocation3], 256
    $region13: #{encoder_positional_embedding.1} parent=1 // pred_fallthru
      _
    // Predicated region
    $region14: #{encoder_positional_embedding.1} parent=1 // pred_check
      _
    $region15: #{encoder_positional_embedding.1} parent=1 // pred_check_branch
      %36 = sbr.rel (0) target = $region17
    $region16: #{encoder_positional_embedding.1} parent=1 // pred_region
      %37 = dma.done [#allocation6], 128
    $region17: #{encoder_positional_embedding.1} parent=1 // pred_fallthru
      _
    %v38 = vld [vmem:[#allocation2] sm:$0xff]
    %v39 = vld [vmem:[#allocation2 + $0x8] sm:$0xff]
    %v40 = vld [vmem:[#allocation5] sm:$0xff]
    %v41 = vadd.f32 %v38, %v40
    %v42 = vadd.f32 %v39, %v40
    %vm43 = vcmask 261120
    %44 = vst.msk [vmem:[#allocation7] sm:$0xff] %vm43, %v41
    %45 = vst.msk [vmem:[#allocation7 + $0x8] sm:$0xff] %vm43, %v42
    // Predicated region
    $region18: #{encoder_positional_embedding.1} parent=1 // pred_check
      _
    $region19: #{encoder_positional_embedding.1} parent=1 // pred_check_branch
      %47 = sbr.rel (0) target = $region21
    $region20: #{encoder_positional_embedding.1} parent=1 // pred_region
      %s49 = ssub.s32 256, 256
      %50 = vsyncadd [#allocation4], %s49
      %s51 = sshll.u32 [#allocation7], 4
      %s52 = int_to_ptr.vmem [resolvable:$true] %s51
      %57 = dma.vmem_to_hbm [thread:$0]  %s52, 256, %s2, [#allocation4], 128, 128, 8
    $region21: #{encoder_positional_embedding.1} parent=1 // pred_fallthru
      _
    // Predicated region
    $region22: #{encoder_positional_embedding.1} parent=1 // pred_check
      _
    $region23: #{encoder_positional_embedding.1} parent=1 // pred_check_branch
      %59 = sbr.rel (0) target = $region25
    $region24: #{encoder_positional_embedding.1} parent=1 // pred_region
      %60 = dma.done [#allocation4], 256
    $region25: #{encoder_positional_embedding.1} parent=1 // pred_fallthru
      _
    %61 = vsyncpa [#allocation3], 1
    %62 = vsyncpa [#allocation6], 1
    %63 = vsyncpa [#allocation4], 1

</llo_original>
